<compile_context>
chip_gen: v5e
topology: v5e:2x2
jax: 0.10.0
libtpu: 0.0.40
codegen_flags: <defaults>
</compile_context>

<pallas_src>
import functools

import jax
import jax.numpy as jnp
from jax.experimental import pallas as pl
from jax.experimental.pallas import tpu as pltpu


def _row_inv_denom(x_f32, d_x, eps):
    """Per-row 1 / (rms_x + eps), shape [TB, 1]. x_f32 is [TB, D] float32."""
    d = x_f32.shape[-1]
    if d_x == d:
        ss = jnp.sum(x_f32 * x_f32, axis=-1, keepdims=True)
    else:
        # Partial RMSNorm: only the first d_x features contribute to the norm.
        # Mask with an iota compare (VPU) instead of slicing, so we never
        # materialize a sub-(8,128)-tile copy in VMEM.
        lane = jax.lax.broadcasted_iota(jnp.int32, x_f32.shape, x_f32.ndim - 1)
        ss = jnp.sum(jnp.where(lane < d_x, x_f32 * x_f32, 0.0),
                     axis=-1, keepdims=True)
    rms = jnp.sqrt(ss * (1.0 / d_x))  # == ||x_partial|| * d_x**-0.5
    # eps is added AFTER the sqrt (exactly like the torch module), so we can't
    # fold it into an rsqrt; one exact divide per row is negligible.
    return 1.0 / (rms + eps)


def rmsnorm_kernel(x_ref, scale_ref, o_ref, *, d_x, eps):
    x = x_ref[...].astype(jnp.float32)
    inv = _row_inv_denom(x, d_x, eps)                       # [TB, 1]
    out = (x * inv) * scale_ref[...].astype(jnp.float32)    # [TB, D]
    o_ref[...] = out.astype(o_ref.dtype)


def rmsnorm_bias_kernel(x_ref, scale_ref, offset_ref, o_ref, *, d_x, eps):
    x = x_ref[...].astype(jnp.float32)
    inv = _row_inv_denom(x, d_x, eps)
    out = (x * inv) * scale_ref[...].astype(jnp.float32) \
          + offset_ref[...].astype(jnp.float32)
    o_ref[...] = out.astype(o_ref.dtype)


def _choose_row_tile(rows, d, itemsize, *, tile_budget_bytes=2 << 20,
                     max_tile=1024):
    """Row-tile size: ~2 MiB per x tile, multiple of 8 sublanes, <= rows."""
    row_bytes = d * max(itemsize, 4)  # f32 temporaries dominate in-kernel
    tb = max(1, tile_budget_bytes // max(1, row_bytes))
    tb = min(tb, max_tile, rows)
    if tb >= rows:
        return rows  # full extent is always a legal block shape
    return max(8, (tb // 8) * 8)


def rms_norm(x, scale, offset=None, *, p=-1.0, eps=1e-8):
    """Pallas TPU RMSNorm.

    x:      [..., D]   (any number of leading dims)
    scale:  [D]
    offset: [D] or None (the optional bias term)
    p:      partial-RMSNorm fraction, default -1.0 (disabled)
    eps:    epsilon added AFTER the sqrt (matches the torch module)
    """
    orig_shape = x.shape
    D = orig_shape[-1]
    rows = 1
    for s in orig_shape[:-1]:
        rows *= s
    x2d = x.reshape(rows, D)
    scale2d = scale.reshape(1, D)

    if p < 0.0 or p > 1.0:
        d_x = D
    else:
        d_x = int(D * p)

    TB = _choose_row_tile(rows, D, jnp.dtype(x.dtype).itemsize)
    grid = (pl.cdiv(rows, TB),)

    in_specs = [
        pl.BlockSpec((TB, D), lambda i: (i, 0)),   # x tile (double-buffered)
        pl.BlockSpec((1, D), lambda i: (0, 0)),    # scale (VMEM-resident)
    ]
    args = [x2d, scale2d]
    if offset is not None:
        in_specs.append(pl.BlockSpec((1, D), lambda i: (0, 0)))  # offset resident
        args.append(offset.reshape(1, D))
        kernel = functools.partial(rmsnorm_bias_kernel, d_x=d_x, eps=eps)
    else:
        kernel = functools.partial(rmsnorm_kernel, d_x=d_x, eps=eps)

    out = pl.pallas_call(
        kernel,
        out_shape=jax.ShapeDtypeStruct((rows, D), x.dtype),
        grid_spec=pltpu.PrefetchScalarGridSpec(
            num_scalar_prefetch=0,
            grid=grid,
            in_specs=in_specs,
            out_specs=pl.BlockSpec((TB, D), lambda i: (i, 0)),
        ),
        compiler_params=pltpu.CompilerParams(
            dimension_semantics=("parallel",)),
    )(*args)
    return out.reshape(orig_shape)


if __name__ == "__main__":
    key = jax.random.PRNGKey(0)
    k_x, k_s, k_o = jax.random.split(key, 3)

    batch, seq, hidden = 2, 8, 32  # RMSNorm(dim=hidden)

    x = jax.random.normal(k_x, (batch, seq, hidden), dtype=jnp.float32)
    scale = 1.0 + 0.1 * jax.random.normal(k_s, (hidden,), dtype=jnp.float32)
    offset = 0.05 * jax.random.normal(k_o, (hidden,), dtype=jnp.float32)

    def ref_rmsnorm(x, scale, offset=None, p=-1.0, eps=1e-8):
        d = x.shape[-1]
        if p < 0.0 or p > 1.0:
            norm_x = jnp.linalg.norm(x, axis=-1, keepdims=True)
            d_x = d
        else:
            d_x = int(d * p)
            norm_x = jnp.linalg.norm(x[..., :d_x], axis=-1, keepdims=True)
        rms_x = norm_x * (d_x ** (-0.5))
        x_normed = x / (rms_x + eps)
        out = scale * x_normed
        if offset is not None:
            out = out + offset
        return out

    # Default config: p=-1.0 (full norm), bias=False.
    out = jax.block_until_ready(rms_norm(x, scale))
    ref = ref_rmsnorm(x, scale)
    assert out.shape == x.shape
    assert jnp.allclose(out, ref, atol=1e-5, rtol=1e-5)

    # Partial RMSNorm (p=0.5) with bias term.
    out2 = jax.block_until_ready(rms_norm(x, scale, offset, p=0.5))
    ref2 = ref_rmsnorm(x, scale, offset, p=0.5)
    assert jnp.allclose(out2, ref2, atol=1e-5, rtol=1e-5)

    print("KERNEL_OK")
</pallas_src>

<mosaic_0001>
module attributes {stable_mosaic.version = 11 : i64} {
  func.func @rmsnorm_kernel(%arg0: i32, %arg1: memref<16x32xf32, #tpu.memory_space<vmem>>, %arg2: memref<1x32xf32, #tpu.memory_space<vmem>>, %arg3: memref<16x32xf32, #tpu.memory_space<vmem>>) attributes {dimension_semantics = [#tpu.dimension_semantics<parallel>], iteration_bounds = array<i64: 1>, scalar_prefetch = 0 : i64, scratch_operands = 0 : i64, tpu.core_type = #tpu.core_type<tc>, window_params = [{transform_indices = @transform_0, window_bounds = array<i64: 16, 32>}, {pipeline_mode = #tpu.pipeline_mode<synchronous>, transform_indices = @transform_1, window_bounds = array<i64: 1, 32>}, {transform_indices = @transform_2, window_bounds = array<i64: 16, 32>}]} {
    %c0 = arith.constant 0 : index
    %c0_0 = arith.constant 0 : index
    %0 = vector.load %arg1[%c0, %c0_0] : memref<16x32xf32, #tpu.memory_space<vmem>>, vector<16x32xf32>
    %1 = arith.mulf %0, %0 : vector<16x32xf32>
    %cst = arith.constant dense<0.000000e+00> : vector<16xf32>
    %2 = vector.multi_reduction <add>, %1, %cst [1] : vector<16x32xf32> to vector<16xf32>
    %3 = vector.shape_cast %2 : vector<16xf32> to vector<16x1xf32>
    %cst_1 = arith.constant 3.125000e-02 : f32
    %4 = vector.broadcast %cst_1 : f32 to vector<16x1xf32>
    %5 = arith.mulf %3, %4 : vector<16x1xf32>
    %6 = math.sqrt %5 : vector<16x1xf32>
    %cst_2 = arith.constant 9.99999993E-9 : f32
    %7 = vector.broadcast %cst_2 : f32 to vector<16x1xf32>
    %8 = arith.addf %6, %7 : vector<16x1xf32>
    %cst_3 = arith.constant 1.000000e+00 : f32
    %9 = vector.broadcast %cst_3 : f32 to vector<16x1xf32>
    %10 = arith.divf %9, %8 : vector<16x1xf32>
    %11 = vector.broadcast %10 : vector<16x1xf32> to vector<16x32xf32>
    %12 = arith.mulf %0, %11 : vector<16x32xf32>
    %c0_4 = arith.constant 0 : index
    %c0_5 = arith.constant 0 : index
    %13 = vector.load %arg2[%c0_4, %c0_5] : memref<1x32xf32, #tpu.memory_space<vmem>>, vector<1x32xf32>
    %14 = vector.broadcast %13 : vector<1x32xf32> to vector<16x32xf32>
    %15 = arith.mulf %12, %14 : vector<16x32xf32>
    %c0_6 = arith.constant 0 : index
    %c0_7 = arith.constant 0 : index
    %16 = vector.load %arg3[%c0_6, %c0_7] : memref<16x32xf32, #tpu.memory_space<vmem>>, vector<16x32xf32>
    tpu.vector_store %arg3[%c0_6, %c0_7], %15 {strides = array<i32>} : memref<16x32xf32, #tpu.memory_space<vmem>>, vector<16x32xf32>,
    return
  }
  func.func @transform_0(%arg0: i32) -> (i32, i32) {
    %c0_i32 = arith.constant 0 : i32
    %c0_i32_0 = arith.constant 0 : i32
    return %arg0, %c0_i32 : i32, i32
  }
  func.func @transform_1(%arg0: i32) -> (i32, i32) {
    %c0_i32 = arith.constant 0 : i32
    %c0_i32_0 = arith.constant 0 : i32
    %c0_i32_1 = arith.constant 0 : i32
    return %c0_i32, %c0_i32_0 : i32, i32
  }
  func.func @transform_2(%arg0: i32) -> (i32, i32) {
    %c0_i32 = arith.constant 0 : i32
    %c0_i32_0 = arith.constant 0 : i32
    return %arg0, %c0_i32 : i32, i32
  }
}

</mosaic_0001>

<llo_original>
// kernel: tpu_custom_call.1
$region0: #{tpu_custom_call.1}
  #allocation0 [shape = 'u32[]', space=smem, size = 0x4, offset = 0x4, fixed_abs, tag = 'smem constant byte address 0x4 - core index']
  #allocation1 [shape = 'u32[72,128]{1,0:T(1,128)}', space=vmem, size = 0x9000, scoped, tag = 'internal scratch']
  %s0 = inlined_call_operand.hbm [shape: f32[16,32], index: 0, kind: input, shape index: {}]
  %s1 = inlined_call_operand.hbm [shape: f32[1,32], index: 1, kind: input, shape index: {}]
  %s2 = inlined_call_operand.hbm [shape: f32[16,32], index: 2, kind: output, shape index: {}]
  %s3 = sld [smem:[#allocation0]]
  $region26: #{tpu_custom_call.1} parent=0
    _
  %s5 = ssub.s32 1, %s3
  %s6 = scalar_select 0, %s5, %s3
  $region1: #{tpu_custom_call.1} parent=0
    #allocation2 [shape = 'u8[8192]{0}', space=vmem, size = 0x2000, scoped, tag = 'input window, operand 0, single buffered']
    #allocation3 [shape = 's32[1]{0}', space=sflag, size = 0x4, scoped, tag = 'scoped memory for tpu_custom_call.1']
    #allocation4 [shape = 's32[1]{0}', space=sflag, size = 0x4, scoped, tag = 'scoped memory for tpu_custom_call.1']
    #allocation5 [shape = 'u8[512]{0}', space=vmem, size = 0x400, scoped, tag = 'input window, operand 1, single buffered']
    #allocation6 [shape = 's32[1]{0}', space=sflag, size = 0x4, scoped, tag = 'scoped memory for tpu_custom_call.1']
    #allocation7 [shape = 'u8[8192]{0}', space=vmem, size = 0x2000, scoped, tag = 'output window, operand 0, single buffered']
    %7 = vsyncpa [#allocation3], 0
    %8 = vsyncpa [#allocation6], 0
    %9 = vsyncpa [#allocation4], 0
    // Predicated region
    $region2: #{tpu_custom_call.1} parent=1 // pred_check
      _
    $region3: #{tpu_custom_call.1} parent=1 // pred_check_branch
      %11 = sbr.rel (0) target = $region5
    $region4: #{tpu_custom_call.1} parent=1 // pred_region
      %13 = vsyncadd [#allocation3], 0
      %s14 = sshll.u32 %s0, 4
      %s15 = int_to_ptr.hbm [resolvable:$true] %s14
      %s16 = sshll.u32 [#allocation2], 4
      %s17 = int_to_ptr.vmem [resolvable:$true] %s16
      %22 = dma.hbm_to_vmem [thread:$0]  %s15, 256, %s17, [#allocation3], 128, 128, 8
    $region5: #{tpu_custom_call.1} parent=1 // pred_fallthru
      _
    // Predicated region
    $region6: #{tpu_custom_call.1} parent=1 // pred_check
      _
    $region7: #{tpu_custom_call.1} parent=1 // pred_check_branch
      %24 = sbr.rel (0) target = $region9
    $region8: #{tpu_custom_call.1} parent=1 // pred_region
      %26 = vsyncadd [#allocation6], 0
      %s28 = sshll.u32 %s1, 4
      %s29 = int_to_ptr.hbm [resolvable:$true] %s28
      %s30 = sshll.u32 [#allocation5], 4
      %s31 = int_to_ptr.vmem [resolvable:$true] %s30
      %33 = dma.hbm_to_vmem [thread:$0]  %s29, 16, %s31, [#allocation6]
    $region9: #{tpu_custom_call.1} parent=1 // pred_fallthru
      _
    // Predicated region
    $region10: #{tpu_custom_call.1} parent=1 // pred_check
      _
    $region11: #{tpu_custom_call.1} parent=1 // pred_check_branch
      %35 = sbr.rel (0) target = $region13
    $region12: #{tpu_custom_call.1} parent=1 // pred_region
      %37 = dma.done [#allocation3], 256
    $region13: #{tpu_custom_call.1} parent=1 // pred_fallthru
      _
    // Predicated region
    $region14: #{tpu_custom_call.1} parent=1 // pred_check
      _
    $region15: #{tpu_custom_call.1} parent=1 // pred_check_branch
      %39 = sbr.rel (0) target = $region17
    $region16: #{tpu_custom_call.1} parent=1 // pred_region
      %41 = dma.done [#allocation6], 16
    $region17: #{tpu_custom_call.1} parent=1 // pred_fallthru
      _
    %v42 = vld [vmem:[#allocation2] sm:$0xff]
    %v43 = vld [vmem:[#allocation2 + $0x8] sm:$0xff]
    %v44 = vmul.f32 %v42, %v42
    %v45 = vmul.f32 %v43, %v43
    %vm46 = vcmask 261120
    %v47 = vsel %vm46, %v44, 0.0
    %48 = vadd.xlane.f32.xlu0 %v47
    %v49 = vpop.xlane.xlu0 %48
    %v50 = vsel %vm46, %v45, 0.0
    %51 = vadd.xlane.f32.xlu0 %v50
    %v52 = vpop.xlane.xlu0 %51
    %v53 = vmul.f32 %v49, 0.03125
    %v54 = vmul.f32 %v52, 0.03125
    %v55 = vrsqrt.pop %v53
    %v56 = vmul.f32 %v55, %v53
    %v57 = vmul.f32 %v56, %v55
    %v58 = vmul.f32 0.5, %v57
    %v59 = vsub.f32 1.5, %v58
    %v60 = vmul.f32 %v55, %v59
    %v61 = vmul.f32 %v53, %v60
    %vm62 = vcmp.eq.f32.partialorder %v53, inf
    %v63 = vsel %vm62, %v53, %v61
    %vm64 = vcmp.eq.f32.partialorder %v53, 0.0
    %v65 = vand.u32 %v53, 2147483648
    %v66 = vsel %vm64, %v65, %v63
    %v67 = vrsqrt.pop %v54
    %v68 = vmul.f32 %v67, %v54
    %v69 = vmul.f32 %v68, %v67
    %v70 = vmul.f32 0.5, %v69
    %v71 = vsub.f32 1.5, %v70
    %v72 = vmul.f32 %v67, %v71
    %v73 = vmul.f32 %v54, %v72
    %vm74 = vcmp.eq.f32.partialorder %v54, inf
    %v75 = vsel %vm74, %v54, %v73
    %vm76 = vcmp.eq.f32.partialorder %v54, 0.0
    %v77 = vand.u32 %v54, 2147483648
    %v78 = vsel %vm76, %v77, %v75
    %v79 = vadd.f32 %v66, 1e-08
    %v80 = vadd.f32 %v78, 1e-08
    %v81 = vrcp.pop %v79
    %v82 = vmul.f32 %v79, %v81
    %v83 = vsub.f32 1.0, %v82
    %v84 = vmul.f32 %v81, %v83
    %v85 = vadd.f32 %v81, %v84
    %vm86 = vweird.f32 %v79
    %vm87 = vweird.f32 %v81
    %vm88 = vmor %vm86, %vm87
    %v89 = vsel %vm88, %v81, %v85
    %v90 = vand.u32 2147483647, %v79
    %vm91 = vcmp.eq.f32.partialorder %v90, 8.507059e+37
    %v92 = vand.u32 %v79, 2147483648
    %v93 = vor.u32 1.1754944e-38, %v92
    %v94 = vsel %vm91, %v93, %v89
    %v95 = vmul.f32 1.0, %v94
    %v96 = vrcp.pop %v80
    %v97 = vmul.f32 %v80, %v96
    %v98 = vsub.f32 1.0, %v97
    %v99 = vmul.f32 %v96, %v98
    %v100 = vadd.f32 %v96, %v99
    %vm101 = vweird.f32 %v80
    %vm102 = vweird.f32 %v96
    %vm103 = vmor %vm101, %vm102
    %v104 = vsel %vm103, %v96, %v100
    %v105 = vand.u32 2147483647, %v80
    %vm106 = vcmp.eq.f32.partialorder %v105, 8.507059e+37
    %v107 = vand.u32 %v80, 2147483648
    %v108 = vor.u32 1.1754944e-38, %v107
    %v109 = vsel %vm106, %v108, %v104
    %v110 = vmul.f32 1.0, %v109
    %v111 = vmul.f32 %v42, %v95
    %v112 = vmul.f32 %v43, %v110
    %v113 = vld [vmem:[#allocation5] sm:$0x1]
    %v115 = vperm.slane %v113, 0
    %v117 = vmul.f32 %v111, %v115
    %v118 = vmul.f32 %v112, %v115
    %119 = vst.msk [vmem:[#allocation7] sm:$0xff] %vm46, %v117
    %120 = vst.msk [vmem:[#allocation7 + $0x8] sm:$0xff] %vm46, %v118
    // Predicated region
    $region18: #{tpu_custom_call.1} parent=1 // pred_check
      _
    $region19: #{tpu_custom_call.1} parent=1 // pred_check_branch
      %122 = sbr.rel (0) target = $region21
    $region20: #{tpu_custom_call.1} parent=1 // pred_region
      %124 = vsyncadd [#allocation4], 0
      %s125 = sshll.u32 [#allocation7], 4
      %s126 = int_to_ptr.vmem [resolvable:$true] %s125
      %s127 = sshll.u32 %s2, 4
      %s128 = int_to_ptr.hbm [resolvable:$true] %s127
      %133 = dma.vmem_to_hbm [thread:$0]  %s126, 256, %s128, [#allocation4], 128, 128, 8
    $region21: #{tpu_custom_call.1} parent=1 // pred_fallthru
      _
    // Predicated region
    $region22: #{tpu_custom_call.1} parent=1 // pred_check
      _
    $region23: #{tpu_custom_call.1} parent=1 // pred_check_branch
      %135 = sbr.rel (0) target = $region25
    $region24: #{tpu_custom_call.1} parent=1 // pred_region
      %137 = dma.done [#allocation4], 256
    $region25: #{tpu_custom_call.1} parent=1 // pred_fallthru
      _
    %138 = vsyncpa [#allocation3], 1
    %139 = vsyncpa [#allocation6], 1
    %140 = vsyncpa [#allocation4], 1

</llo_original>
